<compile_context>
chip_gen: v5e
topology: v5e:2x2
jax: 0.10.0
libtpu: 0.0.40
codegen_flags: <defaults>
</compile_context>

<pallas_src>
import jax
import jax.numpy as jnp
from jax.experimental import pallas as pl
from jax.experimental.pallas import tpu as pltpu


def _round_up(x: int, m: int) -> int:
    return ((x + m - 1) // m) * m


def _patch_embed_kernel(p_ref, w_ref, b_ref, o_ref):
    # p_ref: (tm, K) patch rows     w_ref: (K, E) projection weight
    # b_ref: (1, E) bias            o_ref: (tm, E) output rows
    acc = jnp.dot(p_ref[...], w_ref[...], preferred_element_type=jnp.float32)
    o_ref[...] = (acc + b_ref[...]).astype(o_ref.dtype)


def patch_embed_pallas(x, w_conv, b_conv, patch_size, *, block_rows=256):
    """PatchEmbed forward.

    x:       (B, C, H, W)
    w_conv:  (E, C, patch, patch)   -- PyTorch Conv2d weight layout
    b_conv:  (E,)                   -- Conv2d bias
    returns: (B, num_patches, E)
    """
    B, C, H, W = x.shape
    E = w_conv.shape[0]
    gh, gw = H // patch_size, W // patch_size
    num_patches = gh * gw
    K = C * patch_size * patch_size

    # --- im2col (layout only; stride == kernel so no duplication) ------------
    # (B, C, gh, ps, gw, ps) -> (B, gh, gw, C, ps, ps) -> (B*P, K)
    patches = x.reshape(B, C, gh, patch_size, gw, patch_size)
    patches = patches.transpose(0, 2, 4, 1, 3, 5).reshape(B * num_patches, K)

    # Conv weight (E, C, ps, ps) flattened the same way -> (K, E)
    w2d = w_conv.reshape(E, K).T
    b2d = b_conv.reshape(1, E)

    # --- row tiling -----------------------------------------------------------
    M = B * num_patches
    tm = min(block_rows, _round_up(M, 8))       # multiple of 8 sublanes
    Mp = _round_up(M, tm)
    if Mp != M:
        patches = jnp.pad(patches, ((0, Mp - M), (0, 0)))

    out2d = pl.pallas_call(
        _patch_embed_kernel,
        out_shape=jax.ShapeDtypeStruct((Mp, E), x.dtype),
        grid=(Mp // tm,),
        in_specs=[
            pl.BlockSpec((tm, K), lambda i: (i, 0)),   # patch rows (pipelined)
            pl.BlockSpec((K, E), lambda i: (0, 0)),    # weight (grid-invariant)
            pl.BlockSpec((1, E), lambda i: (0, 0)),    # bias   (grid-invariant)
        ],
        out_specs=pl.BlockSpec((tm, E), lambda i: (i, 0)),
        compiler_params=pltpu.CompilerParams(
            dimension_semantics=("parallel",)),        # megacore-friendly
    )(patches, w2d, b2d)

    return out2d[:M].reshape(B, num_patches, E)


def patch_embed_reference(x, w_conv, b_conv, patch_size):
    """Pure-JAX mirror of the PyTorch forward (conv -> flatten(2) -> transpose)."""
    y = jax.lax.conv_general_dilated(
        x, w_conv,
        window_strides=(patch_size, patch_size),
        padding="VALID",
        dimension_numbers=("NCHW", "OIHW", "NCHW"))
    y = y + b_conv.reshape(1, -1, 1, 1)
    B, E, gh, gw = y.shape
    return y.reshape(B, E, gh * gw).transpose(0, 2, 1)


if __name__ == "__main__":
    # Small config consistent with the module (in_chans=3, embed_dim=96).
    B, Cin, H, W = 2, 3, 32, 32
    patch, E = 8, 96                     # grid 4x4 -> 16 patches, K = 3*8*8 = 192

    key = jax.random.PRNGKey(0)
    kx, kw, kb = jax.random.split(key, 3)

    x = jax.random.normal(kx, (B, Cin, H, W), dtype=jnp.float32)
    w = jax.random.normal(kw, (E, Cin, patch, patch), dtype=jnp.float32) * 0.05
    b = jax.random.normal(kb, (E,), dtype=jnp.float32) * 0.05

    out = patch_embed_pallas(x, w, b, patch)
    out = jax.block_until_ready(out)

    ref = patch_embed_reference(x, w, b, patch)
    num_patches = (H // patch) * (W // patch)
    assert out.shape == (B, num_patches, E), out.shape
    err = jnp.max(jnp.abs(out - ref))
    assert jnp.allclose(out, ref, atol=2e-3, rtol=2e-3), f"max abs err {err}"

    print("KERNEL_OK")
</pallas_src>

<mosaic_0001>
module attributes {stable_mosaic.version = 11 : i64} {
  func.func @_patch_embed_kernel(%arg0: i32, %arg1: memref<32x192xf32, #tpu.memory_space<vmem>>, %arg2: memref<192x96xf32, #tpu.memory_space<vmem>>, %arg3: memref<1x96xf32, #tpu.memory_space<vmem>>, %arg4: memref<32x96xf32, #tpu.memory_space<vmem>>) attributes {dimension_semantics = [#tpu.dimension_semantics<parallel>], iteration_bounds = array<i64: 1>, scalar_prefetch = 0 : i64, scratch_operands = 0 : i64, tpu.core_type = #tpu.core_type<tc>, window_params = [{transform_indices = @transform_0, window_bounds = array<i64: 32, 192>}, {pipeline_mode = #tpu.pipeline_mode<synchronous>, transform_indices = @transform_1, window_bounds = array<i64: 192, 96>}, {pipeline_mode = #tpu.pipeline_mode<synchronous>, transform_indices = @transform_2, window_bounds = array<i64: 1, 96>}, {transform_indices = @transform_3, window_bounds = array<i64: 32, 96>}]} {
    %c0 = arith.constant 0 : index
    %c0_0 = arith.constant 0 : index
    %0 = vector.load %arg1[%c0, %c0_0] : memref<32x192xf32, #tpu.memory_space<vmem>>, vector<32x192xf32>
    %c0_1 = arith.constant 0 : index
    %c0_2 = arith.constant 0 : index
    %1 = vector.load %arg2[%c0_1, %c0_2] : memref<192x96xf32, #tpu.memory_space<vmem>>, vector<192x96xf32>
    %cst = arith.constant dense<0.000000e+00> : vector<32x96xf32>
    %2 = tpu.matmul %0, %1, %cst {dimension_numbers = #tpu.dot_dimension_numbers<[1], [0], [0], [1], [0, 0, 1, 1], [], []>} : vector<32x192xf32>, vector<192x96xf32>, vector<32x96xf32> -> vector<32x96xf32>
    %c0_3 = arith.constant 0 : index
    %c0_4 = arith.constant 0 : index
    %3 = vector.load %arg3[%c0_3, %c0_4] : memref<1x96xf32, #tpu.memory_space<vmem>>, vector<1x96xf32>
    %4 = vector.broadcast %3 : vector<1x96xf32> to vector<32x96xf32>
    %5 = arith.addf %2, %4 : vector<32x96xf32>
    %c0_5 = arith.constant 0 : index
    %c0_6 = arith.constant 0 : index
    %6 = vector.load %arg4[%c0_5, %c0_6] : memref<32x96xf32, #tpu.memory_space<vmem>>, vector<32x96xf32>
    tpu.vector_store %arg4[%c0_5, %c0_6], %5 {strides = array<i32>} : memref<32x96xf32, #tpu.memory_space<vmem>>, vector<32x96xf32>,
    return
  }
  func.func @transform_0(%arg0: i32) -> (i32, i32) {
    %c0_i32 = arith.constant 0 : i32
    %c0_i32_0 = arith.constant 0 : i32
    return %arg0, %c0_i32 : i32, i32
  }
  func.func @transform_1(%arg0: i32) -> (i32, i32) {
    %c0_i32 = arith.constant 0 : i32
    %c0_i32_0 = arith.constant 0 : i32
    %c0_i32_1 = arith.constant 0 : i32
    return %c0_i32, %c0_i32_0 : i32, i32
  }
  func.func @transform_2(%arg0: i32) -> (i32, i32) {
    %c0_i32 = arith.constant 0 : i32
    %c0_i32_0 = arith.constant 0 : i32
    %c0_i32_1 = arith.constant 0 : i32
    return %c0_i32, %c0_i32_0 : i32, i32
  }
  func.func @transform_3(%arg0: i32) -> (i32, i32) {
    %c0_i32 = arith.constant 0 : i32
    %c0_i32_0 = arith.constant 0 : i32
    return %arg0, %c0_i32 : i32, i32
  }
}

</mosaic_0001>

<llo_original>
// kernel: tpu_custom_call.1
$region0: #{tpu_custom_call.1}
  #allocation0 [shape = 'u32[]', space=smem, size = 0x4, offset = 0x4, fixed_abs, tag = 'smem constant byte address 0x4 - core index']
  #allocation1 [shape = 'u32[72,128]{1,0:T(1,128)}', space=vmem, size = 0x9000, scoped, tag = 'internal scratch']
  %s0 = inlined_call_operand.hbm [shape: f32[32,192], index: 0, kind: input, shape index: {}]
  %s1 = inlined_call_operand.hbm [shape: f32[192,96], index: 1, kind: input, shape index: {}]
  %s2 = inlined_call_operand.vmem [shape: f32[1,96], index: 2, kind: input, shape index: {}]
  %s3 = inlined_call_operand.hbm [shape: f32[32,96], index: 3, kind: output, shape index: {}]
  %s4 = sld [smem:[#allocation0]]
  $region30: #{tpu_custom_call.1} parent=0
    _
  %s6 = ssub.s32 1, %s4
  %s7 = scalar_select 0, %s6, %s4
  $region1: #{tpu_custom_call.1} parent=0
    #allocation2 [shape = 'u8[32768]{0}', space=vmem, size = 0x8000, scoped, tag = 'input window, operand 0, single buffered']
    #allocation3 [shape = 's32[1]{0}', space=sflag, size = 0x4, scoped, tag = 'scoped memory for tpu_custom_call.1']
    #allocation4 [shape = 's32[1]{0}', space=sflag, size = 0x4, scoped, tag = 'scoped memory for tpu_custom_call.1']
    #allocation5 [shape = 'u8[98304]{0}', space=vmem, size = 0x18000, scoped, tag = 'input window, operand 1, single buffered']
    #allocation6 [shape = 's32[1]{0}', space=sflag, size = 0x4, scoped, tag = 'scoped memory for tpu_custom_call.1']
    #allocation7 [shape = 'u8[16384]{0}', space=vmem, size = 0x4000, scoped, tag = 'output window, operand 0, single buffered']
    %8 = vsyncpa [#allocation3], 0
    %9 = vsyncpa [#allocation6], 0
    %10 = vsyncpa [#allocation4], 0
    // Predicated region
    $region2: #{tpu_custom_call.1} parent=1 // pred_check
      _
    $region3: #{tpu_custom_call.1} parent=1 // pred_check_branch
      %12 = sbr.rel (0) target = $region5
    $region4: #{tpu_custom_call.1} parent=1 // pred_region
      %14 = vsyncadd [#allocation3], 0
      %s15 = sshll.u32 %s0, 4
      %s16 = int_to_ptr.hbm [resolvable:$true] %s15
      %s17 = sshll.u32 [#allocation2], 4
      %s18 = int_to_ptr.vmem [resolvable:$true] %s17
      %23 = dma.hbm_to_vmem [thread:$0]  %s16, 1024, %s18, [#allocation3], 256, 256, 16
    $region5: #{tpu_custom_call.1} parent=1 // pred_fallthru
      _
    // Predicated region
    $region6: #{tpu_custom_call.1} parent=1 // pred_check
      _
    $region7: #{tpu_custom_call.1} parent=1 // pred_check_branch
      %25 = sbr.rel (0) target = $region9
    $region8: #{tpu_custom_call.1} parent=1 // pred_region
      %27 = vsyncadd [#allocation6], 0
      %s28 = sshll.u32 %s1, 4
      %s29 = int_to_ptr.hbm [resolvable:$true] %s28
      %s30 = sshll.u32 [#allocation5], 4
      %s31 = int_to_ptr.vmem [resolvable:$true] %s30
      %36 = dma.hbm_to_vmem [thread:$0]  %s29, 3072, %s31, [#allocation6], 128, 128, 8
    $region9: #{tpu_custom_call.1} parent=1 // pred_fallthru
      _
    // Predicated region
    $region10: #{tpu_custom_call.1} parent=1 // pred_check
      _
    $region11: #{tpu_custom_call.1} parent=1 // pred_check_branch
      %38 = sbr.rel (0) target = $region13
    $region12: #{tpu_custom_call.1} parent=1 // pred_region
      _
    $region13: #{tpu_custom_call.1} parent=1 // pred_fallthru
      _
    // Predicated region
    $region14: #{tpu_custom_call.1} parent=1 // pred_check
      _
    $region15: #{tpu_custom_call.1} parent=1 // pred_check_branch
      %40 = sbr.rel (0) target = $region17
    $region16: #{tpu_custom_call.1} parent=1 // pred_region
      %42 = dma.done [#allocation3], 1024
    $region17: #{tpu_custom_call.1} parent=1 // pred_fallthru
      _
    // Predicated region
    $region18: #{tpu_custom_call.1} parent=1 // pred_check
      _
    $region19: #{tpu_custom_call.1} parent=1 // pred_check_branch
      %44 = sbr.rel (0) target = $region21
    $region20: #{tpu_custom_call.1} parent=1 // pred_region
      %46 = dma.done [#allocation6], 3072
    $region21: #{tpu_custom_call.1} parent=1 // pred_fallthru
      _
    %v47 = vld [vmem:[#allocation2] sm:$0xff]
    %v48 = vld [vmem:[#allocation2 + $0x8] sm:$0xff]
    %v49 = vld [vmem:[#allocation2 + $0x10] sm:$0xff]
    %v50 = vld [vmem:[#allocation2 + $0x18] sm:$0xff]
    %v51 = vld [vmem:[#allocation2 + $0x20] sm:$0xff]
    %v52 = vld [vmem:[#allocation2 + $0x28] sm:$0xff]
    %v53 = vld [vmem:[#allocation2 + $0x30] sm:$0xff]
    %v54 = vld [vmem:[#allocation2 + $0x38] sm:$0xff]
    %v55 = vld [vmem:[#allocation5] sm:$0xff]
    %v56 = vld [vmem:[#allocation5 + $0x8] sm:$0xff]
    %v57 = vld [vmem:[#allocation5 + $0x10] sm:$0xff]
    %v58 = vld [vmem:[#allocation5 + $0x18] sm:$0xff]
    %v59 = vld [vmem:[#allocation5 + $0x20] sm:$0xff]
    %v60 = vld [vmem:[#allocation5 + $0x28] sm:$0xff]
    %v61 = vld [vmem:[#allocation5 + $0x30] sm:$0xff]
    %v62 = vld [vmem:[#allocation5 + $0x38] sm:$0xff]
    %v63 = vld [vmem:[#allocation5 + $0x40] sm:$0xff]
    %v64 = vld [vmem:[#allocation5 + $0x48] sm:$0xff]
    %v65 = vld [vmem:[#allocation5 + $0x50] sm:$0xff]
    %v66 = vld [vmem:[#allocation5 + $0x58] sm:$0xff]
    %v67 = vld [vmem:[#allocation5 + $0x60] sm:$0xff]
    %v68 = vld [vmem:[#allocation5 + $0x68] sm:$0xff]
    %v69 = vld [vmem:[#allocation5 + $0x70] sm:$0xff]
    %v70 = vld [vmem:[#allocation5 + $0x78] sm:$0xff]
    %v71 = vld [vmem:[#allocation5 + $0x80] sm:$0xff]
    %v72 = vld [vmem:[#allocation5 + $0x88] sm:$0xff]
    %v73 = vld [vmem:[#allocation5 + $0x90] sm:$0xff]
    %v74 = vld [vmem:[#allocation5 + $0x98] sm:$0xff]
    %v75 = vld [vmem:[#allocation5 + $0xa0] sm:$0xff]
    %v76 = vld [vmem:[#allocation5 + $0xa8] sm:$0xff]
    %v77 = vld [vmem:[#allocation5 + $0xb0] sm:$0xff]
    %v78 = vld [vmem:[#allocation5 + $0xb8] sm:$0xff]
    %v79 = vld [vmem:[%s2] sm:$0x1]
    %v81 = vperm.slane %v79, 0
    %vm83 = vcmask 523264
    %v85 = vsel %vm83, %v48, 0
    %v88 = vsel %vm83, %v50, 0
    %v91 = vsel %vm83, %v52, 0
    %v94 = vsel %vm83, %v54, 0
    %96 = vmatpush.msra.mxu0 %v70
    %97 = vmatpush.msra.mxu0 %v69
    %98 = vmatpush.msra.mxu0 %v68
    %99 = vmatpush.msra.mxu0 %v67
    %100 = vmatpush.msra.mxu0 %v66
    %101 = vmatpush.msra.mxu0 %v65
    %102 = vmatpush.msra.mxu0 %v64
    %103 = vmatpush.msra.mxu0 %v63
    %104 = vmatpush.msra.mxu0 %v62
    %105 = vmatpush.msra.mxu0 %v61
    %106 = vmatpush.msra.mxu0 %v60
    %107 = vmatpush.msra.mxu0 %v59
    %108 = vmatpush.msra.mxu0 %v58
    %109 = vmatpush.msra.mxu0 %v57
    %110 = vmatpush.msra.mxu0 %v56
    %111 = vmatpush.msra.mxu0 %v55
    %112 = vmatmul.f32.gmra.mxu0 %v47
    %v113 = vpop.f32.mrf.mxu0
    %v114 = vadd.f32 %v81, %v113
    %115 = vmatmul.f32.gmra.mxu0 %v49
    %v116 = vpop.f32.mrf.mxu0
    %v117 = vadd.f32 %v81, %v116
    %118 = vmatmul.f32.gmra.mxu0 %v51
    %v119 = vpop.f32.mrf.mxu0
    %v120 = vadd.f32 %v81, %v119
    %121 = vmatmul.f32.gmra.mxu0 %v53
    %v122 = vpop.f32.mrf.mxu0
    %v123 = vadd.f32 %v81, %v122
    %124 = vdwg.mxu0
    %125 = vmatpush.msra.mxu0 0.0
    %126 = vmatpush.msra.mxu0 0.0
    %127 = vmatpush.msra.mxu0 0.0
    %128 = vmatpush.msra.mxu0 0.0
    %129 = vmatpush.msra.mxu0 0.0
    %130 = vmatpush.msra.mxu0 0.0
    %131 = vmatpush.msra.mxu0 0.0
    %132 = vmatpush.msra.mxu0 0.0
    %133 = vmatpush.msra.mxu0 %v78
    %134 = vmatpush.msra.mxu0 %v77
    %135 = vmatpush.msra.mxu0 %v76
    %136 = vmatpush.msra.mxu0 %v75
    %137 = vmatpush.msra.mxu0 %v74
    %138 = vmatpush.msra.mxu0 %v73
    %139 = vmatpush.msra.mxu0 %v72
    %140 = vmatpush.msra.mxu0 %v71
    %141 = vmatmul.f32.gmra.mxu0 %v85
    %v142 = vpop.f32.mrf.mxu0
    %v143 = vadd.f32 %v114, %v142
    %144 = vmatmul.f32.gmra.mxu0 %v88
    %v145 = vpop.f32.mrf.mxu0
    %v146 = vadd.f32 %v117, %v145
    %147 = vmatmul.f32.gmra.mxu0 %v91
    %v148 = vpop.f32.mrf.mxu0
    %v149 = vadd.f32 %v120, %v148
    %150 = vmatmul.f32.gmra.mxu0 %v94
    %v151 = vpop.f32.mrf.mxu0
    %v152 = vadd.f32 %v123, %v151
    %153 = vdwg.mxu0
    %vm154 = vcmask 785408
    %155 = vst.msk [vmem:[#allocation7] sm:$0xff] %vm154, %v143
    %156 = vst.msk [vmem:[#allocation7 + $0x8] sm:$0xff] %vm154, %v146
    %157 = vst.msk [vmem:[#allocation7 + $0x10] sm:$0xff] %vm154, %v149
    %158 = vst.msk [vmem:[#allocation7 + $0x18] sm:$0xff] %vm154, %v152
    // Predicated region
    $region22: #{tpu_custom_call.1} parent=1 // pred_check
      _
    $region23: #{tpu_custom_call.1} parent=1 // pred_check_branch
      %160 = sbr.rel (0) target = $region25
    $region24: #{tpu_custom_call.1} parent=1 // pred_region
      %162 = vsyncadd [#allocation4], 0
      %s163 = sshll.u32 [#allocation7], 4
      %s164 = int_to_ptr.vmem [resolvable:$true] %s163
      %s165 = sshll.u32 %s3, 4
      %s166 = int_to_ptr.hbm [resolvable:$true] %s165
      %171 = dma.vmem_to_hbm [thread:$0]  %s164, 512, %s166, [#allocation4], 128, 128, 8
    $region25: #{tpu_custom_call.1} parent=1 // pred_fallthru
      _
    // Predicated region
    $region26: #{tpu_custom_call.1} parent=1 // pred_check
      _
    $region27: #{tpu_custom_call.1} parent=1 // pred_check_branch
      %173 = sbr.rel (0) target = $region29
    $region28: #{tpu_custom_call.1} parent=1 // pred_region
      %175 = dma.done [#allocation4], 512
    $region29: #{tpu_custom_call.1} parent=1 // pred_fallthru
      _
    %176 = vsyncpa [#allocation3], 1
    %177 = vsyncpa [#allocation6], 1
    %178 = vsyncpa [#allocation4], 1

</llo_original>
